<compile_context>
chip_gen: v6e
topology: v6e:2x2x1
jax: 0.10.0
libtpu: 0.0.40
codegen_flags: <defaults>
</compile_context>

<pallas_src>
import functools

import jax
import jax.numpy as jnp
import numpy as np
from jax.experimental import pallas as pl
from jax.experimental.pallas import tpu as pltpu

PAD = 0  # Constants.PAD


# ----------------------------- Pallas kernel --------------------------------
def _attn_kernel(nids_ref, q_ref, kt_ref, o_ref, *, inv_temp):
    # nids_ref: (BT, 1, Lk)  int32  -- key node ids (PAD == 0 marks padding)
    # q_ref:    (BT, TQ, Dk) bf16
    # kt_ref:   (BT, Dk, Lk) bf16   -- K already transposed (no in-kernel xpose)
    # o_ref:    (BT, TQ, Lk) out dtype
    q = q_ref[...]
    kt = kt_ref[...]

    # scores = Q K^T / sqrt(d_k); contract on d_k, batched over BT rows.
    scores = jnp.einsum("bqd,bdk->bqk", q, kt,
                        preferred_element_type=jnp.float32) * inv_temp

    # Key-pad mask built in-kernel from the raw node ids (no HBM mask array).
    # -inf matches torch masked_fill(-inf): padded keys get exactly 0 weight;
    # a fully padded key row yields NaN, same as torch.softmax over all -inf.
    pad = nids_ref[...] == PAD                      # (BT, 1, Lk) bool
    scores = jnp.where(pad, -jnp.inf, scores)

    # Softmax over the key axis.
    row_max = jnp.max(scores, axis=-1, keepdims=True)
    e = jnp.exp(scores - row_max)                   # exactly 0 at pad keys
    denom = jnp.sum(e, axis=-1, keepdims=True)
    o_ref[...] = (e * pl.reciprocal(denom, approx=False)).astype(o_ref.dtype)


# --------------------------- tiling / VMEM budget ----------------------------
def _vmem_budget_bytes():
    """~75% of this generation's VMEM (48 MiB on v7x, 96 MiB on v5e/v6e)."""
    cap = 64 * 1024 * 1024  # conservative fallback (v7x per-TC)
    try:
        cap = int(getattr(pltpu.get_tpu_info(), "vmem_capacity_bytes", cap))
    except Exception:
        pass
    return (cap * 3) // 4


def _pick_tiles(batch, lq, lk_pad, dk, out_bytes, budget):
    """Pick (batch_tile, lq_tile): keep BT as large as possible, shrink Lq next."""
    def step_bytes(bt, tq):
        # Double-buffered per-grid-step tiles.
        return 2 * bt * (tq * lk_pad * out_bytes   # out
                         + tq * dk * 2             # Q   bf16
                         + lk_pad * dk * 2         # K^T bf16
                         + lk_pad * 4)             # nids i32

    # Legal Lq tiles: full Lq, or divisors of Lq that are multiples of 8.
    tq_cands = [lq] + [t for t in range(8 * (lq // 8), 0, -8)
                       if t != lq and lq % t == 0]
    bt_cands = [d for d in range(batch, 0, -1) if batch % d == 0]

    for bt in bt_cands:              # prefer large batch tiles,
        for tq in tq_cands:          # then the largest Lq tile that fits
            if step_bytes(bt, tq) <= budget:
                return bt, tq
    return 1, tq_cands[-1]           # minimal legal tile (always returned)


# ------------------------------- wrapper -------------------------------------
def masked_cross_attention(q, kt, g1_nids, d_k, n_head, batch,
                           out_dtype=jnp.float32):
    """q: (H*B, Lq, Dk) bf16 (row = h*B + b); kt: (H*B, Dk, Lk) bf16 (K^T);
    g1_nids: (B, Lk) int32.  Returns attention weights (H*B, Lq, Lk)."""
    hb, lq, dk = q.shape
    _, _, lk = kt.shape
    assert hb == n_head * batch and kt.shape == (hb, dk, lk)
    inv_temp = float(1.0 / np.power(d_k, 0.5))

    # Lane-dense output: pad the key axis to a multiple of 128. Extra keys get
    # PAD ids, so the in-kernel mask zeroes their weights; we slice them off.
    lk_pad = ((lk + 127) // 128) * 128
    nids = g1_nids.astype(jnp.int32)
    if lk_pad != lk:
        kt = jnp.pad(kt, ((0, 0), (0, 0), (0, lk_pad - lk)))
        nids = jnp.pad(nids, ((0, 0), (0, lk_pad - lk)), constant_values=PAD)
    # (B, 1, Lk_pad): BT becomes a leading block dim, so any divisor of B is
    # a legal batch tile (no (8,128) constraint on it).
    nids = nids.reshape(batch, 1, lk_pad)

    budget = _vmem_budget_bytes()
    out_bytes = jnp.dtype(out_dtype).itemsize
    bt, tq = _pick_tiles(batch, lq, lk_pad, dk, out_bytes, budget)
    n_bt, n_qt = batch // bt, lq // tq
    # Parallel work for the v7x dual-TC split comes from (n_bt * n_head * n_qt);
    # n_head >= 2 in practice keeps both cores busy even when n_bt == n_qt == 1.

    kernel = functools.partial(_attn_kernel, inv_temp=inv_temp)
    attn = pl.pallas_call(
        kernel,
        out_shape=jax.ShapeDtypeStruct((hb, lq, lk_pad), out_dtype),
        # Lq tile innermost: nids / K^T block indices are constant across the
        # inner steps (and across heads for nids), so those DMAs are skipped.
        grid=(n_bt, n_head, n_qt),
        in_specs=[
            pl.BlockSpec((bt, 1, lk_pad), lambda b, h, qi: (b, 0, 0)),            # nids
            pl.BlockSpec((bt, tq, dk), lambda b, h, qi: (h * n_bt + b, qi, 0)),   # Q
            pl.BlockSpec((bt, dk, lk_pad), lambda b, h, qi: (h * n_bt + b, 0, 0)),  # K^T
        ],
        out_specs=pl.BlockSpec((bt, tq, lk_pad),
                               lambda b, h, qi: (h * n_bt + b, qi, 0)),
        compiler_params=pltpu.CompilerParams(
            dimension_semantics=("parallel", "parallel", "parallel"),
            vmem_limit_bytes=budget),
    )(nids, q, kt)

    return attn[:, :, :lk] if lk_pad != lk else attn


# ------------------------------ module glue ---------------------------------
class PairDecoderPallas:
    """JAX/Pallas re-implementation of PairDecoder (n_layers == 1)."""

    def __init__(self, n_layers, n_head, d_k, d_v, d_model, d_inner, dropout=0.1,
                 key=jax.random.PRNGKey(0)):
        assert n_layers == 1
        self.n_head = n_head
        self.d_k = d_k
        self.d_v = d_v
        self.d_model = d_model
        kq_w, kq_b, kk_w, kk_b = jax.random.split(key, 4)
        std = np.sqrt(2.0 / (d_model + d_k))
        self.w_qs = jax.random.normal(kq_w, (n_head * d_k, d_model), jnp.float32) * std
        self.b_qs = jax.random.normal(kq_b, (n_head * d_k,), jnp.float32) * 0.01
        self.w_ks = jax.random.normal(kk_w, (n_head * d_k, d_model), jnp.float32) * std
        self.b_ks = jax.random.normal(kk_b, (n_head * d_k,), jnp.float32) * 0.01
        # TODO(synk): PairDecoderLayer source unavailable; only the returned
        # cross-attention weights (the sole forward output) are reproduced.
        # Dropout is identity (eval mode); bias init differs from nn.Linear's
        # default uniform (kernel-irrelevant).

    def __call__(self, g1_embs, g2_embs, g1_nids, g2_nids):
        b, lk, _ = g1_embs.shape   # g1 = keys
        _, lq, _ = g2_embs.shape   # g2 = queries
        h, d_k = self.n_head, self.d_k

        # Per-head projections produced directly in the layout the kernel wants:
        # Q as (H*B, Lq, Dk) and K already transposed as (H*B, Dk, Lk) — no
        # post-projection transpose pass over the activations.
        wq = self.w_qs.reshape(h, d_k, self.d_model)
        wk = self.w_ks.reshape(h, d_k, self.d_model)
        bq = self.b_qs.reshape(h, d_k)
        bk = self.b_ks.reshape(h, d_k)
        q = jnp.einsum("bqm,hdm->hbqd", g2_embs, wq) + bq[:, None, None, :]
        kt = jnp.einsum("bkm,hdm->hbdk", g1_embs, wk) + bk[:, None, :, None]
        q = q.astype(jnp.bfloat16).reshape(h * b, lq, d_k)     # row = h*B + b
        kt = kt.astype(jnp.bfloat16).reshape(h * b, d_k, lk)

        attn = masked_cross_attention(q, kt, g1_nids.astype(jnp.int32),
                                      d_k, h, b)               # (h*b, lq, lk)
        return (attn,)


# --------------------------------- demo -------------------------------------
if __name__ == "__main__":
    batch, n_head, d_k, d_v, d_model, d_inner = 2, 4, 8, 8, 32, 64
    len_g1, len_g2 = 16, 8   # g1 = keys, g2 = queries

    root = jax.random.PRNGKey(0)
    k1, k2, k3 = jax.random.split(root, 3)

    g1_embs = jax.random.normal(k1, (batch, len_g1, d_model), jnp.float32)
    g2_embs = jax.random.normal(k2, (batch, len_g2, d_model), jnp.float32)

    # node-id sequences; trailing positions are PAD (=0), never a full-PAD row.
    g1_nids = jnp.concatenate(
        [jax.random.randint(k3, (batch, len_g1 - 4), 1, 100),
         jnp.zeros((batch, 4), jnp.int32)], axis=1)
    g2_nids = jnp.ones((batch, len_g2), jnp.int32)

    decoder = PairDecoderPallas(n_layers=1, n_head=n_head, d_k=d_k, d_v=d_v,
                                d_model=d_model, d_inner=d_inner)

    (attn,) = decoder(g1_embs, g2_embs, g1_nids, g2_nids)
    attn = jax.block_until_ready(attn)

    # Sanity: shape, rows sum to ~1, padded keys get exactly zero weight.
    assert attn.shape == (n_head * batch, len_g2, len_g1)
    assert bool(jnp.allclose(jnp.sum(attn, axis=-1), 1.0, atol=1e-4))
    assert bool(jnp.all(attn[:, :, -4:] == 0.0))
    assert bool(jnp.all(jnp.isfinite(attn)))

    print("KERNEL_OK")
</pallas_src>

<mosaic_0001>
module attributes {stable_mosaic.version = 11 : i64} {
  func.func @_attn_kernel(%arg0: i32, %arg1: i32, %arg2: i32, %arg3: memref<2x1x128xi32, #tpu.memory_space<vmem>>, %arg4: memref<2x8x8xbf16, #tpu.memory_space<vmem>>, %arg5: memref<2x8x128xbf16, #tpu.memory_space<vmem>>, %arg6: memref<2x8x128xf32, #tpu.memory_space<vmem>>) attributes {dimension_semantics = [#tpu.dimension_semantics<parallel>, #tpu.dimension_semantics<parallel>, #tpu.dimension_semantics<parallel>], iteration_bounds = array<i64: 1, 4, 1>, scalar_prefetch = 0 : i64, scratch_operands = 0 : i64, tpu.core_type = #tpu.core_type<tc>, window_params = [{transform_indices = @transform_0, window_bounds = array<i64: 2, 1, 128>}, {transform_indices = @transform_1, window_bounds = array<i64: 2, 8, 8>}, {transform_indices = @transform_2, window_bounds = array<i64: 2, 8, 128>}, {transform_indices = @transform_3, window_bounds = array<i64: 2, 8, 128>}]} {
    %c0 = arith.constant 0 : index
    %c0_0 = arith.constant 0 : index
    %c0_1 = arith.constant 0 : index
    %0 = vector.load %arg4[%c0, %c0_0, %c0_1] : memref<2x8x8xbf16, #tpu.memory_space<vmem>>, vector<2x8x8xbf16>
    %c0_2 = arith.constant 0 : index
    %c0_3 = arith.constant 0 : index
    %c0_4 = arith.constant 0 : index
    %1 = vector.load %arg5[%c0_2, %c0_3, %c0_4] : memref<2x8x128xbf16, #tpu.memory_space<vmem>>, vector<2x8x128xbf16>
    "tpu.trace_start"() <{level = 10 : i32, message = "bqd,bdk->bqk"}> : () -> ()
    %cst = arith.constant dense<0.000000e+00> : vector<2x8x128xf32>
    %2 = tpu.matmul %0, %1, %cst {dimension_numbers = #tpu.dot_dimension_numbers<[2], [1], [1], [2], [0, 0, 0, 1, 1, 2], [0], [0]>} : vector<2x8x8xbf16>, vector<2x8x128xbf16>, vector<2x8x128xf32> -> vector<2x8x128xf32>
    "tpu.trace_stop"() : () -> ()
    %cst_5 = arith.constant 0.353553385 : f32
    %3 = vector.broadcast %cst_5 : f32 to vector<2x8x128xf32>
    %4 = arith.mulf %2, %3 : vector<2x8x128xf32>
    %c0_6 = arith.constant 0 : index
    %c0_7 = arith.constant 0 : index
    %c0_8 = arith.constant 0 : index
    %5 = vector.load %arg3[%c0_6, %c0_7, %c0_8] : memref<2x1x128xi32, #tpu.memory_space<vmem>>, vector<2x1x128xi32>
    %c0_i32 = arith.constant 0 : i32
    %6 = vector.broadcast %c0_i32 : i32 to vector<2x1x128xi32>
    %7 = arith.cmpi eq, %5, %6 : vector<2x1x128xi32>
    %cst_9 = arith.constant 0xFF800000 : f32
    %8 = vector.shape_cast %7 : vector<2x1x128xi1> to vector<2x1x128xi1>
    %9 = vector.broadcast %8 : vector<2x1x128xi1> to vector<2x8x128xi1>
    %10 = vector.broadcast %cst_9 : f32 to vector<2x8x128xf32>
    %11 = arith.select %9, %10, %4 : vector<2x8x128xi1>, vector<2x8x128xf32>
    %cst_10 = arith.constant dense<0xFF800000> : vector<2x8xf32>
    %12 = vector.multi_reduction <maximumf>, %11, %cst_10 [2] : vector<2x8x128xf32> to vector<2x8xf32>
    %13 = vector.shape_cast %12 : vector<2x8xf32> to vector<2x8x1xf32>
    %14 = vector.broadcast %13 : vector<2x8x1xf32> to vector<2x8x128xf32>
    %15 = arith.subf %11, %14 : vector<2x8x128xf32>
    %16 = math.exp %15 : vector<2x8x128xf32>
    %cst_11 = arith.constant dense<0.000000e+00> : vector<2x8xf32>
    %17 = vector.multi_reduction <add>, %16, %cst_11 [2] : vector<2x8x128xf32> to vector<2x8xf32>
    %18 = vector.shape_cast %17 : vector<2x8xf32> to vector<2x8x1xf32>
    %19 = tpu.reciprocal %18 : vector<2x8x1xf32> -> vector<2x8x1xf32>
    %20 = vector.broadcast %19 : vector<2x8x1xf32> to vector<2x8x128xf32>
    %21 = arith.mulf %16, %20 : vector<2x8x128xf32>
    %c0_12 = arith.constant 0 : index
    %c0_13 = arith.constant 0 : index
    %c0_14 = arith.constant 0 : index
    %22 = vector.load %arg6[%c0_12, %c0_13, %c0_14] : memref<2x8x128xf32, #tpu.memory_space<vmem>>, vector<2x8x128xf32>
    tpu.vector_store %arg6[%c0_12, %c0_13, %c0_14], %21 {strides = array<i32>} : memref<2x8x128xf32, #tpu.memory_space<vmem>>, vector<2x8x128xf32>,
    return
  }
  func.func @transform_0(%arg0: i32, %arg1: i32, %arg2: i32) -> (i32, i32, i32) {
    %c0_i32 = arith.constant 0 : i32
    %c0_i32_0 = arith.constant 0 : i32
    %c0_i32_1 = arith.constant 0 : i32
    return %arg0, %c0_i32, %c0_i32_0 : i32, i32, i32
  }
  func.func @transform_1(%arg0: i32, %arg1: i32, %arg2: i32) -> (i32, i32, i32) {
    %c1_i32 = arith.constant 1 : i32
    %0 = arith.muli %arg1, %c1_i32 : i32
    %1 = arith.addi %0, %arg0 : i32
    %c0_i32 = arith.constant 0 : i32
    %c0_i32_0 = arith.constant 0 : i32
    return %1, %arg2, %c0_i32 : i32, i32, i32
  }
  func.func @transform_2(%arg0: i32, %arg1: i32, %arg2: i32) -> (i32, i32, i32) {
    %c1_i32 = arith.constant 1 : i32
    %0 = arith.muli %arg1, %c1_i32 : i32
    %1 = arith.addi %0, %arg0 : i32
    %c0_i32 = arith.constant 0 : i32
    %c0_i32_0 = arith.constant 0 : i32
    %c0_i32_1 = arith.constant 0 : i32
    return %1, %c0_i32, %c0_i32_0 : i32, i32, i32
  }
  func.func @transform_3(%arg0: i32, %arg1: i32, %arg2: i32) -> (i32, i32, i32) {
    %c1_i32 = arith.constant 1 : i32
    %0 = arith.muli %arg1, %c1_i32 : i32
    %1 = arith.addi %0, %arg0 : i32
    %c0_i32 = arith.constant 0 : i32
    %c0_i32_0 = arith.constant 0 : i32
    return %1, %arg2, %c0_i32 : i32, i32, i32
  }
}

</mosaic_0001>

<llo_original>
// kernel: tpu_custom_call.1
$region0: #{tpu_custom_call.1}
  #allocation0 [shape = 'u32[]', space=smem, size = 0x4, offset = 0x4, fixed_abs, tag = 'smem constant byte address 0x4 - core index']
  #allocation1 [shape = 'u32[144,128]{1,0:T(1,128)}', space=vmem, size = 0x12000, scoped, tag = 'internal scratch']
  %s0 = inlined_call_operand.hbm [shape: s32[2,1,128], index: 0, kind: input, shape index: {}]
  %s1 = inlined_call_operand.hbm [shape: bf16[8,8,8], index: 1, kind: input, shape index: {}]
  %s2 = inlined_call_operand.hbm [shape: bf16[8,8,128], index: 2, kind: input, shape index: {}]
  %s3 = inlined_call_operand.hbm [shape: f32[8,8,128], index: 3, kind: output, shape index: {}]
  %s4 = sld [smem:[#allocation0]]
  $region57: #{tpu_custom_call.1} parent=0
    _
  %s6 = ssub.s32 1, %s4
  %s7 = scalar_select 0, %s6, %s4
  $region1: #{tpu_custom_call.1} parent=0
    #allocation2 [shape = 'u8[1024]{0}', space=vmem, size = 0x400, scoped, tag = 'input window, operand 0, single buffered']
    #allocation3 [shape = 's32[2]{0}', space=sflag, size = 0x8, scoped, tag = 'scoped memory for tpu_custom_call.1']
    #allocation4 [shape = 's32[2]{0}', space=sflag, size = 0x8, scoped, tag = 'scoped memory for tpu_custom_call.1']
    #allocation5 [shape = 'u8[8192]{0}', space=vmem, size = 0x2000, scoped, tag = 'input window, operand 1']
    #allocation6 [shape = 's32[2]{0}', space=sflag, size = 0x8, scoped, tag = 'scoped memory for tpu_custom_call.1']
    #allocation7 [shape = 'u8[8192]{0}', space=vmem, size = 0x2000, scoped, tag = 'input window, operand 2']
    #allocation8 [shape = 'u8[16384]{0}', space=vmem, size = 0x4000, scoped, tag = 'output window, operand 0']
    %8 = vsyncpa [#allocation3], 0
    %9 = vsyncpa [#allocation6], 0
    %s10 = scalar_lea.sflag [#allocation6], 1
    %11 = vsyncpa %s10, 0
    %12 = vsyncpa [#allocation4], 0
    %s13 = scalar_lea.sflag [#allocation4], 1
    %14 = vsyncpa %s13, 0
    loop: start=0, step=1, limit=6
    $region2: #{tpu_custom_call.1} parent=1 // loop_pre_header
      _
    $region3: #{tpu_custom_call.1} parent=1 // loop_header
      %s16 = sphi 0, %s20
      %p17 = scmp.ge.s32.totalorder %s16, 6
      %s23 = sphi 0, %s42
      %s24 = sphi 0, %s38
      %s25 = sphi 0, %s34
      %s26 = sphi 0, %s23
      %s27 = sphi 0, %s24
      %s28 = sphi 0, %s25
      %s29 = sphi 0, %s26
      %s30 = sphi 0, %s27
      %s31 = sphi 0, %s28
      %s45 = sphi 0, %s47
      %s48 = sphi 0, %s45
      %s49 = sphi 0, %s48
      %s65 = sphi 0, %s49
      %s75 = sphi 0, %s77
      %s78 = sphi 0, %s75
      %s79 = sphi 0, %s78
      %s95 = sphi 0, %s79
      %s103 = sphi 0, %s105
      %s106 = sphi 0, %s103
      %s107 = sphi 0, %s106
      %s123 = sphi 0, %s107
      %s133 = sphi 0, %s135
      %s136 = sphi 0, %s133
      %s137 = sphi 0, %s136
      %s153 = sphi 0, %s137
    $region4: #{tpu_custom_call.1} parent=1 // loop_header_branch
      %19 = sbr.rel (%p17) target = $region8
    $region5: #{tpu_custom_call.1} parent=1 // loop_body
      %s21 = ssub.s32 %s16, 1
      %s22 = ssub.s32 %s16, 2
      %s32 = sadd.s32 1, %s25
      %p33 = scmp.ge.s32.totalorder %s32, 1
      %s34 = scalar_select %p33, 0, %s32
      %s35 = sadd.s32 1, %s24
      %s36 = scalar_select %p33, %s35, %s24
      %p37 = scmp.ge.s32.totalorder %s36, 4
      %s38 = scalar_select %p37, 0, %s36
      %s39 = sadd.s32 1, %s23
      %s40 = scalar_select %p37, %s39, %s23
      %p41 = scmp.ge.s32.totalorder %s40, 1
      %s42 = scalar_select %p41, 0, %s40
      %s43 = ssub.s32 %s23, %s42
      %p44 = scmp.eq.s32.totalorder %s43, 0
      %s46 = sadd.s32 %s45, 1
      %s47 = scalar_select %p44, %s45, %s46
      %p50 = pneg %p44
      %p51 = scmp.eq.s32.totalorder %s16, 3
      %p52 = por %p50, %p51
      %p53 = scmp.ne.s32.totalorder %s45, %s48
      %p54 = scmp.eq.s32.totalorder %s16, 0
      %p55 = por %p53, %p54
      %p56 = scmp.ne.s32.totalorder %s45, %s48
      %p57 = scmp.eq.s32.totalorder %s21, 3
      %p58 = por %p56, %p57
      %p59 = scmp.ne.s32.totalorder %s48, %s49
      %p60 = scmp.eq.s32.totalorder %s21, 0
      %p61 = por %p59, %p60
      %p62 = scmp.ne.s32.totalorder %s48, %s49
      %p63 = scmp.eq.s32.totalorder %s22, 3
      %p64 = por %p62, %p63
      %p66 = scmp.ne.s32.totalorder %s49, %s65
      %p67 = scmp.eq.s32.totalorder %s22, 0
      %p68 = por %p66, %p67
      %s69 = sadd.s32 %s24, %s23
      %s70 = sadd.s32 %s38, %s42
      %s71 = ssub.s32 %s69, %s70
      %s72 = ssub.s32 %s25, %s34
      %s73 = sor.u32 %s71, %s72
      %p74 = scmp.eq.s32.totalorder %s73, 0
      %s76 = sadd.s32 %s75, 1
      %s77 = scalar_select %p74, %s75, %s76
      %p80 = pneg %p74
      %p81 = scmp.eq.s32.totalorder %s16, 3
      %p82 = por %p80, %p81
      %p83 = scmp.ne.s32.totalorder %s75, %s78
      %p84 = scmp.eq.s32.totalorder %s16, 0
      %p85 = por %p83, %p84
      %p86 = scmp.ne.s32.totalorder %s75, %s78
      %p87 = scmp.eq.s32.totalorder %s21, 3
      %p88 = por %p86, %p87
      %p89 = scmp.ne.s32.totalorder %s78, %s79
      %p90 = scmp.eq.s32.totalorder %s21, 0
      %p91 = por %p89, %p90
      %p92 = scmp.ne.s32.totalorder %s78, %s79
      %p93 = scmp.eq.s32.totalorder %s22, 3
      %p94 = por %p92, %p93
      %p96 = scmp.ne.s32.totalorder %s79, %s95
      %p97 = scmp.eq.s32.totalorder %s22, 0
      %p98 = por %p96, %p97
      %s99 = sadd.s32 %s24, %s23
      %s100 = sadd.s32 %s38, %s42
      %s101 = ssub.s32 %s99, %s100
      %p102 = scmp.eq.s32.totalorder %s101, 0
      %s104 = sadd.s32 %s103, 1
      %s105 = scalar_select %p102, %s103, %s104
      %p108 = pneg %p102
      %p109 = scmp.eq.s32.totalorder %s16, 3
      %p110 = por %p108, %p109
      %p111 = scmp.ne.s32.totalorder %s103, %s106
      %p112 = scmp.eq.s32.totalorder %s16, 0
      %p113 = por %p111, %p112
      %p114 = scmp.ne.s32.totalorder %s103, %s106
      %p115 = scmp.eq.s32.totalorder %s21, 3
      %p116 = por %p114, %p115
      %p117 = scmp.ne.s32.totalorder %s106, %s107
      %p118 = scmp.eq.s32.totalorder %s21, 0
      %p119 = por %p117, %p118
      %p120 = scmp.ne.s32.totalorder %s106, %s107
      %p121 = scmp.eq.s32.totalorder %s22, 3
      %p122 = por %p120, %p121
      %p124 = scmp.ne.s32.totalorder %s107, %s123
      %p125 = scmp.eq.s32.totalorder %s22, 0
      %p126 = por %p124, %p125
      %s127 = sadd.s32 %s24, %s23
      %s128 = sadd.s32 %s38, %s42
      %s129 = ssub.s32 %s127, %s128
      %s130 = ssub.s32 %s25, %s34
      %s131 = sor.u32 %s129, %s130
      %p132 = scmp.eq.s32.totalorder %s131, 0
      %s134 = sadd.s32 %s133, 1
      %s135 = scalar_select %p132, %s133, %s134
      %p138 = pneg %p132
      %p139 = scmp.eq.s32.totalorder %s16, 3
      %p140 = por %p138, %p139
      %p141 = scmp.ne.s32.totalorder %s133, %s136
      %p142 = scmp.eq.s32.totalorder %s16, 0
      %p143 = por %p141, %p142
      %p144 = scmp.ne.s32.totalorder %s133, %s136
      %p145 = scmp.eq.s32.totalorder %s21, 3
      %p146 = por %p144, %p145
      %p147 = scmp.ne.s32.totalorder %s136, %s137
      %p148 = scmp.eq.s32.totalorder %s21, 0
      %p149 = por %p147, %p148
      %p150 = scmp.ne.s32.totalorder %s136, %s137
      %p151 = scmp.eq.s32.totalorder %s22, 3
      %p152 = por %p150, %p151
      %p154 = scmp.ne.s32.totalorder %s137, %s153
      %p155 = scmp.eq.s32.totalorder %s22, 0
      %p156 = por %p154, %p155
      %p157 = scmp.le.s32.totalorder 1, %s16
      %p158 = scmp.lt.s32.totalorder %s16, 5
      %p159 = pnand %p157, %p158
      %p160 = pneg %p159
      // Predicated region
      $region9: #{tpu_custom_call.1} parent=5 // pred_check
        _
      $region10: #{tpu_custom_call.1} parent=5 // pred_check_branch
        %162 = sbr.rel (%p159) target = $region12
      $region11: #{tpu_custom_call.1} parent=5 // pred_region
        %s163 = ssub.s32 %s16, 1
        // Predicated region
        $region13: #{tpu_custom_call.1} parent=11 // pred_check
          %p164 = pneg %p61
        $region14: #{tpu_custom_call.1} parent=11 // pred_check_branch
          %166 = sbr.rel (%p164) target = $region16
        $region15: #{tpu_custom_call.1} parent=11 // pred_region
          %s167 = smul.u32 2, %s26
          %s169 = ssub.s32 32, 32
          %170 = vsyncadd [#allocation3], %s169
          %s171 = smul.addr %s167, 16
          %s172 = scalar_lea.hbm %s0, %s171
          %s173 = sshll.u32 [#allocation2], 4
          %s174 = int_to_ptr.vmem [resolvable:$true] %s173
          %179 = dma.hbm_to_vmem [thread:$0]  %s172, 32, %s174, [#allocation3], 16, 16, 1
        $region16: #{tpu_custom_call.1} parent=11 // pred_fallthru
          _
      $region12: #{tpu_custom_call.1} parent=5 // pred_fallthru
        _
      %p180 = scmp.lt.s32.totalorder %s16, 4
      // Predicated region
      $region17: #{tpu_custom_call.1} parent=5 // pred_check
        %p181 = pneg %p180
      $region18: #{tpu_custom_call.1} parent=5 // pred_check_branch
        %183 = sbr.rel (%p181) target = $region20
      $region19: #{tpu_custom_call.1} parent=5 // pred_region
        // Predicated region
        $region21: #{tpu_custom_call.1} parent=19 // pred_check
          %p184 = pneg %p85
        $region22: #{tpu_custom_call.1} parent=19 // pred_check_branch
          %186 = sbr.rel (%p184) target = $region24
        $region23: #{tpu_custom_call.1} parent=19 // pred_region
          %s187 = sand.u32 %s16, 1
          %s188 = scalar_lea.sflag [#allocation6], %s187
          %s189 = sand.u32 %s75, 1
          %s190 = smul.addr %s189, 8
          %s191 = scalar_lea.vmem [#allocation5], %s190
          %s192 = sadd.s32 %s24, %s23
          %s193 = smul.u32 2, %s192
          %s195 = ssub.s32 128, 128
          %196 = vsyncadd %s188, %s195
          %s197 = sadd.s32 %s25, %s193
          %s198 = smul.addr %s197, 64
          %s199 = scalar_lea.hbm %s1, %s198
          %s200 = sshll.u32 %s191, 4
          %s201 = int_to_ptr.vmem [resolvable:$true] %s200
          %206 = dma.hbm_to_vmem [thread:$0]  %s199, 128, %s201, %s188, 64, 64, 4
        $region24: #{tpu_custom_call.1} parent=19 // pred_fallthru
          _
        // Predicated region
        $region25: #{tpu_custom_call.1} parent=19 // pred_check
          %p207 = pneg %p113
        $region26: #{tpu_custom_call.1} parent=19 // pred_check_branch
          %209 = sbr.rel (%p207) target = $region28
        $region27: #{tpu_custom_call.1} parent=19 // pred_region
          %s210 = sand.u32 %s16, 1
          %s211 = scalar_lea.sflag [#allocation6], %s210
          %s212 = sand.u32 %s103, 1
          %s213 = smul.addr %s212, 8
          %s214 = scalar_lea.vmem [#allocation7], %s213
          %s215 = sadd.s32 %s24, %s23
          %s216 = smul.u32 2, %s215
          %s218 = ssub.s32 128, 128
          %219 = vsyncadd %s211, %s218
          %s220 = smul.addr %s216, 64
          %s221 = scalar_lea.hbm %s2, %s220
          %s222 = sshll.u32 %s214, 4
          %s223 = int_to_ptr.vmem [resolvable:$true] %s222
          %228 = dma.hbm_to_vmem [thread:$0]  %s221, 128, %s223, %s211, 64, 64, 4
        $region28: #{tpu_custom_call.1} parent=19 // pred_fallthru
          _
      $region20: #{tpu_custom_call.1} parent=5 // pred_fallthru
        _
      %p229 = scmp.le.s32.totalorder 1, %s16
      %p230 = scmp.lt.s32.totalorder %s16, 5
      %p231 = pnand %p229, %p230
      %p232 = pneg %p231
      // Predicated region
      $region29: #{tpu_custom_call.1} parent=5 // pred_check
        _
      $region30: #{tpu_custom_call.1} parent=5 // pred_check_branch
        %234 = sbr.rel (%p231) target = $region32
      $region31: #{tpu_custom_call.1} parent=5 // pred_region
        %s235 = ssub.s32 %s16, 1
        // Predicated region
        $region33: #{tpu_custom_call.1} parent=31 // pred_check
          %p236 = pneg %p61
        $region34: #{tpu_custom_call.1} parent=31 // pred_check_branch
          %238 = sbr.rel (%p236) target = $region36
        $region35: #{tpu_custom_call.1} parent=31 // pred_region
          %239 = dma.done [#allocation3], 32
        $region36: #{tpu_custom_call.1} parent=31 // pred_fallthru
          _
        %s240 = sand.u32 %s21, 1
        %s241 = scalar_lea.sflag [#allocation6], %s240
        %s242 = sand.u32 %s78, 1
        %s243 = smul.addr %s242, 8
        %s244 = scalar_lea.vmem [#allocation5], %s243
        // Predicated region
        $region37: #{tpu_custom_call.1} parent=31 // pred_check
          %p245 = pneg %p91
        $region38: #{tpu_custom_call.1} parent=31 // pred_check_branch
          %247 = sbr.rel (%p245) target = $region40
        $region39: #{tpu_custom_call.1} parent=31 // pred_region
          %248 = dma.done %s241, 128
        $region40: #{tpu_custom_call.1} parent=31 // pred_fallthru
          _
        %s249 = sand.u32 %s21, 1
        %s250 = scalar_lea.sflag [#allocation6], %s249
        %s251 = sand.u32 %s106, 1
        %s252 = smul.addr %s251, 8
        %s253 = scalar_lea.vmem [#allocation7], %s252
        // Predicated region
        $region41: #{tpu_custom_call.1} parent=31 // pred_check
          %p254 = pneg %p119
        $region42: #{tpu_custom_call.1} parent=31 // pred_check_branch
          %256 = sbr.rel (%p254) target = $region44
        $region43: #{tpu_custom_call.1} parent=31 // pred_region
          %257 = dma.done %s250, 128
        $region44: #{tpu_custom_call.1} parent=31 // pred_fallthru
          _
        %p258 = pneg %p61
        %p259 = pneg %p58
        %s260 = sand.u32 %s21, 1
        %s261 = scalar_lea.sflag [#allocation6], %s260
        %s262 = sand.u32 %s78, 1
        %s263 = smul.addr %s262, 8
        %s264 = scalar_lea.vmem [#allocation5], %s263
        %p265 = pneg %p91
        %p266 = pneg %p88
        %s267 = sand.u32 %s21, 1
        %s268 = scalar_lea.sflag [#allocation6], %s267
        %s269 = sand.u32 %s106, 1
        %s270 = smul.addr %s269, 8
        %s271 = scalar_lea.vmem [#allocation7], %s270
        %p272 = pneg %p119
        %p273 = pneg %p116
        %p274 = pneg %p149
        %p275 = pneg %p146
        %s276 = sand.u32 %s136, 1
        %s277 = scalar_lea.sflag [#allocation4], %s276
        %s278 = sand.u32 %s136, 1
        %s279 = smul.addr %s278, 16
        %s280 = scalar_lea.vmem [#allocation8], %s279
        %s281 = smul.u32 2, %s26
        %s282 = sadd.s32 %s27, %s26
        %s283 = smul.u32 2, %s282
        %s284 = sadd.s32 %s27, %s26
        %s285 = smul.u32 2, %s284
        %s286 = sadd.s32 %s27, %s26
        %s287 = smul.u32 2, %s286
        %v289 = vld [vmem:[%s244] sm:$0xf]
        %v290 = vld [vmem:[%s244 + $0x4] sm:$0xf]
        %v291 = vld [vmem:[%s253] sm:$0xf]
        %v292 = vld [vmem:[%s253 + $0x4] sm:$0xf]
        %vm293 = vcmask 64512
        %v295 = vsel %vm293, %v289, 0
        %vm297 = vcmask 1043456
        %v299 = vsel %vm297, %v291, 0
        %301 = vmatprep.subr.bf16.mxu0 0
        %302 = vmatpush1.bf16.msra.mxu0 0
        %303 = vmatprep.subr.bf16.mxu0 0
        %304 = vmatpush1.bf16.msra.mxu0 0
        %305 = vmatprep.subr.bf16.mxu0 0
        %306 = vmatpush1.bf16.msra.mxu0 0
        %307 = vmatprep.subr.bf16.mxu0 0
        %308 = vmatpush1.bf16.msra.mxu0 0
        %309 = vmatprep.subr.bf16.mxu0 0
        %310 = vmatpush1.bf16.msra.mxu0 0
        %311 = vmatprep.subr.bf16.mxu0 0
        %312 = vmatpush1.bf16.msra.mxu0 0
        %313 = vmatprep.subr.bf16.mxu0 0
        %314 = vmatpush1.bf16.msra.mxu0 0
        %315 = vmatprep.subr.bf16.mxu0 0
        %316 = vmatpush1.bf16.msra.mxu0 %v299
        %317 = vmatprep.subr.bf16.mxu0 0
        %318 = vmatpush2.bf16.msra.mxu0 0
        %319 = vmatprep.subr.bf16.mxu0 0
        %320 = vmatpush2.bf16.msra.mxu0 0
        %321 = vmatprep.subr.bf16.mxu0 0
        %322 = vmatpush2.bf16.msra.mxu0 0
        %323 = vmatprep.subr.bf16.mxu0 0
        %324 = vmatpush2.bf16.msra.mxu0 0
        %325 = vmatprep.subr.bf16.mxu0 0
        %326 = vmatpush2.bf16.msra.mxu0 0
        %327 = vmatprep.subr.bf16.mxu0 0
        %328 = vmatpush2.bf16.msra.mxu0 0
        %329 = vmatprep.subr.bf16.mxu0 0
        %330 = vmatpush2.bf16.msra.mxu0 0
        %331 = vmatprep.subr.bf16.mxu0 0
        %332 = vmatpush2.bf16.msra.mxu0 0
        %333 = vmatprep.mubr.bf16.mxu0 0
        %334 = vmatmul.mubr.bf16.gmra.mxu0 %v295
        %v335 = vpop.f32.mrf.mxu0
        %v336 = vadd.f32 0.0, %v335
        %v337 = vpop.f32.mrf.mxu0
        %v338 = vpop.f32.mrf.mxu0
        %v339 = vpop.f32.mrf.mxu0
        %340 = vdwg.mxu0
        %v342 = vsel %vm293, %v290, 0
        %v345 = vsel %vm297, %v292, 0
        %347 = vmatprep.subr.bf16.mxu0 0
        %348 = vmatpush1.bf16.msra.mxu0 0
        %349 = vmatprep.subr.bf16.mxu0 0
        %350 = vmatpush1.bf16.msra.mxu0 0
        %351 = vmatprep.subr.bf16.mxu0 0
        %352 = vmatpush1.bf16.msra.mxu0 0
        %353 = vmatprep.subr.bf16.mxu0 0
        %354 = vmatpush1.bf16.msra.mxu0 0
        %355 = vmatprep.subr.bf16.mxu0 0
        %356 = vmatpush1.bf16.msra.mxu0 0
        %357 = vmatprep.subr.bf16.mxu0 0
        %358 = vmatpush1.bf16.msra.mxu0 0
        %359 = vmatprep.subr.bf16.mxu0 0
        %360 = vmatpush1.bf16.msra.mxu0 0
        %361 = vmatprep.subr.bf16.mxu0 0
        %362 = vmatpush1.bf16.msra.mxu0 %v345
        %363 = vmatprep.subr.bf16.mxu0 0
        %364 = vmatpush2.bf16.msra.mxu0 0
        %365 = vmatprep.subr.bf16.mxu0 0
        %366 = vmatpush2.bf16.msra.mxu0 0
        %367 = vmatprep.subr.bf16.mxu0 0
        %368 = vmatpush2.bf16.msra.mxu0 0
        %369 = vmatprep.subr.bf16.mxu0 0
        %370 = vmatpush2.bf16.msra.mxu0 0
        %371 = vmatprep.subr.bf16.mxu0 0
        %372 = vmatpush2.bf16.msra.mxu0 0
        %373 = vmatprep.subr.bf16.mxu0 0
        %374 = vmatpush2.bf16.msra.mxu0 0
        %375 = vmatprep.subr.bf16.mxu0 0
        %376 = vmatpush2.bf16.msra.mxu0 0
        %377 = vmatprep.subr.bf16.mxu0 0
        %378 = vmatpush2.bf16.msra.mxu0 0
        %379 = vmatprep.mubr.bf16.mxu0 0
        %380 = vmatmul.mubr.bf16.gmra.mxu0 %v342
        %v381 = vpop.f32.mrf.mxu0
        %v382 = vadd.f32 0.0, %v381
        %v383 = vpop.f32.mrf.mxu0
        %v384 = vpop.f32.mrf.mxu0
        %v385 = vpop.f32.mrf.mxu0
        %386 = vdwg.mxu0
        %v387 = vmul.f32 %v336, 0.35355338
        %v388 = vmul.f32 %v382, 0.35355338
        %v389 = vld [vmem:[#allocation2] sm:$0x1]
        %v390 = vld [vmem:[#allocation2 + $0x1] sm:$0x1]
        %vm391 = vcmp.eq.s32.totalorder %v389, 0
        %vm392 = vcmp.eq.s32.totalorder %v390, 0
        %v393 = vsel %vm391, 1, 0
        %v394 = vsel %vm392, 1, 0
        %v395 = vlaneseq
        %v396 = vshrl.u32 %v395, 7
        %v397 = vsub.s32 0, %v396
        %v398 = vrot.slane %v393, %v397
        %v399 = vlaneseq
        %v400 = vshrl.u32 %v399, 7
        %v401 = vsub.s32 0, %v400
        %v402 = vrot.slane %v394, %v401
        %vm403 = vcmp.eq.s32.totalorder %v398, 1
        %vm404 = vcmp.eq.s32.totalorder %v402, 1
        %v405 = vsel %vm403, -inf, %v387
        %v406 = vsel %vm404, -inf, %v388
        %407 = vmax.xlane.f32.xlu0 %v405
        %v408 = vpop.xlane.xlu0 %407
        %409 = vmax.xlane.f32.xlu0 %v406
        %v410 = vpop.xlane.xlu0 %409
        %v411 = vsub.f32 %v405, %v408
        %v412 = vsub.f32 %v406, %v410
        %v413 = vmul.f32 %v411, 1.442695
        %v414 = vpow.pop %v413
        %v415 = vmul.f32 %v412, 1.442695
        %v416 = vpow.pop %v415
        %417 = vadd.xlane.f32.xlu0 %v414
        %v418 = vpop.xlane.xlu0 %417
        %419 = vadd.xlane.f32.xlu0 %v416
        %v420 = vpop.xlane.xlu0 %419
        %v421 = vrcp.pop %v418
        %v422 = vrcp.pop %v420
        %v423 = vmul.f32 %v414, %v421
        %v424 = vmul.f32 %v416, %v422
        %425 = vst [vmem:[%s280] sm:$0xff] %v423
        %426 = vst [vmem:[%s280 + $0x8] sm:$0xff] %v424
        %s427 = sand.u32 %s136, 1
        %s428 = scalar_lea.sflag [#allocation4], %s427
        %s429 = sand.u32 %s136, 1
        %s430 = smul.addr %s429, 16
        %s431 = scalar_lea.vmem [#allocation8], %s430
        // Predicated region
        $region45: #{tpu_custom_call.1} parent=31 // pred_check
          %p432 = pneg %p146
        $region46: #{tpu_custom_call.1} parent=31 // pred_check_branch
          %434 = sbr.rel (%p432) target = $region48
        $region47: #{tpu_custom_call.1} parent=31 // pred_region
          %s435 = sadd.s32 %s27, %s26
          %s436 = smul.u32 2, %s435
          %s438 = ssub.s32 256, 256
          %439 = vsyncadd %s428, %s438
          %s440 = sadd.s32 %s28, %s436
          %s441 = smul.addr %s440, 128
          %s442 = scalar_lea.hbm %s3, %s441
          %s443 = sshll.u32 %s431, 4
          %s444 = int_to_ptr.vmem [resolvable:$true] %s443
          %449 = dma.vmem_to_hbm [thread:$0]  %s444, 256, %s442, %s428, 128, 128, 8
        $region48: #{tpu_custom_call.1} parent=31 // pred_fallthru
          _
      $region32: #{tpu_custom_call.1} parent=5 // pred_fallthru
        _
      %p450 = scmp.le.s32.totalorder 2, %s16
      // Predicated region
      $region49: #{tpu_custom_call.1} parent=5 // pred_check
        %p451 = pneg %p450
      $region50: #{tpu_custom_call.1} parent=5 // pred_check_branch
        %453 = sbr.rel (%p451) target = $region52
      $region51: #{tpu_custom_call.1} parent=5 // pred_region
        %s454 = ssub.s32 %s16, 2
        // Predicated region
        $region53: #{tpu_custom_call.1} parent=51 // pred_check
          %p455 = pneg %p152
        $region54: #{tpu_custom_call.1} parent=51 // pred_check_branch
          %457 = sbr.rel (%p455) target = $region56
        $region55: #{tpu_custom_call.1} parent=51 // pred_region
          %s458 = sand.u32 %s137, 1
          %s459 = scalar_lea.sflag [#allocation4], %s458
          %s460 = sand.u32 %s137, 1
          %s461 = smul.addr %s460, 16
          %s462 = scalar_lea.vmem [#allocation8], %s461
          %463 = dma.done %s459, 256
        $region56: #{tpu_custom_call.1} parent=51 // pred_fallthru
          _
      $region52: #{tpu_custom_call.1} parent=5 // pred_fallthru
        _
    $region6: #{tpu_custom_call.1} parent=1 // loop_footer
      %s20 = sadd.s32 1, %s16
    $region7: #{tpu_custom_call.1} parent=1 // loop_footer_branch
      %15 = sbr.rel target = $region3
    $region8: #{tpu_custom_call.1} parent=1 // loop_exit
      _
    %464 = vsyncpa [#allocation3], 1
    %s465 = scalar_lea.sflag [#allocation3], 1
    %466 = vsyncpa %s465, 1
    %467 = vsyncpa [#allocation6], 1
    %s468 = scalar_lea.sflag [#allocation6], 1
    %469 = vsyncpa %s468, 1
    %470 = vsyncpa [#allocation4], 1
    %s471 = scalar_lea.sflag [#allocation4], 1
    %472 = vsyncpa %s471, 1

</llo_original>
